<compile_context>
chip_gen: v7x
topology: tpu7x:2x2x1
jax: 0.10.0
libtpu: 0.0.40
codegen_flags: <defaults>
</compile_context>

<pallas_src>
import functools

import jax
import jax.numpy as jnp
from jax.experimental import pallas as pl
from jax.experimental.pallas import tpu as pltpu

C = 50          # fixed by the PyTorch reshape(-1, 50)
GAMMA = 2.0     # module default; statically 2 -> explicit square in-kernel
SIZE_AVERAGE = True
NUM_CORES = 2   # v7x has 2 TensorCores; harmless extra serial step on v5e/v6e


def _round_up(x, m):
    return ((x + m - 1) // m) * m


def _focal_loss_kernel(x_ref, t_ref, w_ref, out_ref, *,
                       n_rows, tile_n, blocks_per_core):
    c = pl.program_id(0)          # core index        ("parallel")
    j = pl.program_id(1)          # row-block in core ("arbitrary" / reduction)

    @pl.when(j == 0)
    def _():
        out_ref[...] = jnp.zeros_like(out_ref)

    blk = c * blocks_per_core + j                       # global row-block id

    x = x_ref[...].astype(jnp.float32)                  # (TN, C)
    t = t_ref[...]                                      # (TN, 1) int32

    # target logit via one-hot select (equivalent of scatter_/gather)
    col = jax.lax.broadcasted_iota(jnp.int32, x.shape, 1)
    x_t = jnp.sum(jnp.where(col == t, x, 0.0), axis=1, keepdims=True)  # (TN,1)

    # log-sum-exp -> log p_t directly (one (TN,C) exp, two (TN,1) transcendentals)
    m = jnp.max(x, axis=1, keepdims=True)
    lse = m + jnp.log(jnp.sum(jnp.exp(x - m), axis=1, keepdims=True))
    log_p = x_t - lse                                   # (TN, 1), <= 0
    p = jnp.exp(log_p)
    omp = 1.0 - p
    row_loss = -(omp * omp) * log_p * w_ref[...]        # gamma == 2 -> square

    # mask rows past the end of the flattened batch (partial tail block, or
    # extra steps when the block count is odd / smaller than NUM_CORES)
    row = blk * tile_n + jax.lax.broadcasted_iota(jnp.int32, (x.shape[0], 1), 0)
    row_loss = jnp.where(row < n_rows, row_loss, 0.0)

    out_ref[...] = out_ref[...] + jnp.sum(row_loss)


def focal_loss(inputs, targets, weights, *, tile_n=4096):
    """inputs: (B, K, C) logits; targets: (B, K) int; weights: (B,) float."""
    B, K, Cin = inputs.shape
    assert Cin == C, f"class dim must be {C}"
    N = B * K

    x = inputs.reshape(N, C)                    # dtype preserved; upcast in-kernel
    t = targets.reshape(N, 1).astype(jnp.int32)
    # per-row weight (weights.unsqueeze(1) broadcast over K); ~N*4 B, ~2% of
    # the logits HBM stream.
    # TODO(synk): could be derived in-kernel from row // K via SMEM to skip this.
    w = jnp.broadcast_to(weights.astype(jnp.float32)[:, None], (B, K)).reshape(N, 1)

    # big row tiles, multiple of 8 sublanes, never (much) larger than N
    tn = max(8, min(_round_up(tile_n, 8), _round_up(N, 8)))
    num_blocks = pl.cdiv(N, tn)
    bpc = pl.cdiv(num_blocks, NUM_CORES)        # row-blocks per core

    def row_map(ci, ji):
        # clamp so the DMA window always stays inside the array; duplicate
        # steps are zeroed by the in-kernel row mask.
        return (jnp.minimum(ci * bpc + ji, num_blocks - 1), 0)

    kernel = functools.partial(_focal_loss_kernel, n_rows=N, tile_n=tn,
                               blocks_per_core=bpc)

    partials = pl.pallas_call(
        kernel,
        out_shape=jax.ShapeDtypeStruct((NUM_CORES, 1, 1), jnp.float32),
        grid_spec=pltpu.PrefetchScalarGridSpec(
            num_scalar_prefetch=0,
            grid=(NUM_CORES, bpc),
            in_specs=[
                pl.BlockSpec((tn, C), row_map),
                pl.BlockSpec((tn, 1), row_map),
                pl.BlockSpec((tn, 1), row_map),
            ],
            out_specs=pl.BlockSpec((1, 1, 1), lambda ci, ji: (ci, 0, 0)),
        ),
        compiler_params=pltpu.CompilerParams(
            dimension_semantics=("parallel", "arbitrary")),
    )(x, t, w)

    total = jnp.sum(partials)                   # sum the per-core partials
    return total / N if SIZE_AVERAGE else total


def _focal_loss_ref(inputs, targets, weights):
    """Pure-JAX reference mirroring the PyTorch forward."""
    B, K, _ = inputs.shape
    x = inputs.reshape(-1, C).astype(jnp.float32)
    p = jax.nn.softmax(x, axis=1)
    probs = jnp.take_along_axis(p, targets.reshape(-1, 1), axis=1)
    bl = -jnp.power(1.0 - probs, GAMMA) * jnp.log(probs)
    bl = bl.reshape(B, -1) * weights[:, None]
    return bl.mean() if SIZE_AVERAGE else bl.sum()


if __name__ == "__main__":
    # "alpha" parameter from __init__ (unused by the PyTorch forward).
    alpha = jnp.ones((C, 1), jnp.float32)  # TODO(synk): alpha unused in forward

    B, K = 2, 8
    key = jax.random.PRNGKey(0)
    k1, k2, k3 = jax.random.split(key, 3)
    inputs = jax.random.normal(k1, (B, K, C), jnp.float32)
    targets = jax.random.randint(k2, (B, K), 0, C, jnp.int32)
    weights = jax.random.uniform(k3, (B,), jnp.float32, 0.5, 1.5)

    loss = focal_loss(inputs, targets, weights)
    jax.block_until_ready(loss)

    ref = _focal_loss_ref(inputs, targets, weights)
    assert jnp.allclose(loss, ref, rtol=1e-5, atol=1e-5), (loss, ref)
    print("KERNEL_OK")
</pallas_src>

<mosaic_0001>
module attributes {stable_mosaic.version = 11 : i64} {
  func.func @_focal_loss_kernel(%arg0: i32, %arg1: i32, %arg2: memref<16x50xf32, #tpu.memory_space<vmem>>, %arg3: memref<16x1xi32, #tpu.memory_space<vmem>>, %arg4: memref<16x1xf32, #tpu.memory_space<vmem>>, %arg5: memref<1x1x1xf32, #tpu.memory_space<vmem>>) attributes {dimension_semantics = [#tpu.dimension_semantics<parallel>, #tpu.dimension_semantics<arbitrary>], iteration_bounds = array<i64: 2, 1>, scalar_prefetch = 0 : i64, scratch_operands = 0 : i64, tpu.core_type = #tpu.core_type<tc>, window_params = [{transform_indices = @transform_0, window_bounds = array<i64: 16, 50>}, {transform_indices = @transform_1, window_bounds = array<i64: 16, 1>}, {transform_indices = @transform_2, window_bounds = array<i64: 16, 1>}, {transform_indices = @transform_3, window_bounds = array<i64: 1, 1, 1>}]} {
    %c0_i32 = arith.constant 0 : i32
    %0 = arith.cmpi eq, %arg1, %c0_i32 : i32
    %1 = arith.extui %0 : i1 to i32
    %c0_i32_0 = arith.constant 0 : i32
    %2 = arith.cmpi ne, %1, %c0_i32_0 : i32
    scf.if %2 {
      %cst_20 = arith.constant 0.000000e+00 : f32
      %49 = vector.broadcast %cst_20 : f32 to vector<1x1x1xf32>
      %c0_21 = arith.constant 0 : index
      %c0_22 = arith.constant 0 : index
      %c0_23 = arith.constant 0 : index
      %50 = vector.load %arg5[%c0_21, %c0_22, %c0_23] : memref<1x1x1xf32, #tpu.memory_space<vmem>>, vector<1x1x1xf32>
      tpu.vector_store %arg5[%c0_21, %c0_22, %c0_23], %49 {strides = array<i32>} : memref<1x1x1xf32, #tpu.memory_space<vmem>>, vector<1x1x1xf32>,
    } else {
    }
    %c1_i32 = arith.constant 1 : i32
    %3 = arith.muli %arg0, %c1_i32 : i32
    %4 = arith.addi %3, %arg1 : i32
    %c0 = arith.constant 0 : index
    %c0_1 = arith.constant 0 : index
    %5 = vector.load %arg2[%c0, %c0_1] : memref<16x50xf32, #tpu.memory_space<vmem>>, vector<16x50xf32>
    %c0_2 = arith.constant 0 : index
    %c0_3 = arith.constant 0 : index
    %6 = vector.load %arg3[%c0_2, %c0_3] : memref<16x1xi32, #tpu.memory_space<vmem>>, vector<16x1xi32>
    %7 = tpu.iota {dimensions = array<i32: 1>} : vector<16x50xi32>
    %8 = vector.broadcast %6 : vector<16x1xi32> to vector<16x50xi32>
    %9 = arith.cmpi eq, %7, %8 : vector<16x50xi32>
    %cst = arith.constant 0.000000e+00 : f32
    %10 = vector.broadcast %cst : f32 to vector<16x50xf32>
    %11 = arith.select %9, %5, %10 : vector<16x50xi1>, vector<16x50xf32>
    %cst_4 = arith.constant dense<0.000000e+00> : vector<16xf32>
    %12 = vector.multi_reduction <add>, %11, %cst_4 [1] : vector<16x50xf32> to vector<16xf32>
    %13 = vector.shape_cast %12 : vector<16xf32> to vector<16x1xf32>
    %cst_5 = arith.constant dense<0xFF800000> : vector<16xf32>
    %14 = vector.multi_reduction <maximumf>, %5, %cst_5 [1] : vector<16x50xf32> to vector<16xf32>
    %15 = vector.shape_cast %14 : vector<16xf32> to vector<16x1xf32>
    %16 = vector.broadcast %15 : vector<16x1xf32> to vector<16x50xf32>
    %17 = arith.subf %5, %16 : vector<16x50xf32>
    %18 = math.exp %17 : vector<16x50xf32>
    %cst_6 = arith.constant dense<0.000000e+00> : vector<16xf32>
    %19 = vector.multi_reduction <add>, %18, %cst_6 [1] : vector<16x50xf32> to vector<16xf32>
    %20 = vector.shape_cast %19 : vector<16xf32> to vector<16x1xf32>
    %21 = math.log %20 : vector<16x1xf32>
    %22 = arith.addf %15, %21 : vector<16x1xf32>
    %23 = arith.subf %13, %22 : vector<16x1xf32>
    %24 = math.exp %23 : vector<16x1xf32>
    %cst_7 = arith.constant 1.000000e+00 : f32
    %25 = vector.broadcast %cst_7 : f32 to vector<16x1xf32>
    %26 = arith.subf %25, %24 : vector<16x1xf32>
    %27 = arith.mulf %26, %26 : vector<16x1xf32>
    %cst_8 = arith.constant 0.000000e+00 : f32
    %28 = vector.broadcast %cst_8 : f32 to vector<16x1xf32>
    %29 = arith.subf %28, %27 : vector<16x1xf32>
    %30 = arith.mulf %29, %23 : vector<16x1xf32>
    %c0_9 = arith.constant 0 : index
    %c0_10 = arith.constant 0 : index
    %31 = vector.load %arg4[%c0_9, %c0_10] : memref<16x1xf32, #tpu.memory_space<vmem>>, vector<16x1xf32>
    %32 = arith.mulf %30, %31 : vector<16x1xf32>
    %c16_i32 = arith.constant 16 : i32
    %33 = arith.muli %4, %c16_i32 : i32
    %34 = tpu.iota {dimensions = array<i32: 0>} : vector<16x1xi32>
    %35 = vector.broadcast %33 : i32 to vector<16x1xi32>
    %36 = arith.addi %35, %34 : vector<16x1xi32>
    %c16_i32_11 = arith.constant 16 : i32
    %37 = vector.broadcast %c16_i32_11 : i32 to vector<16x1xi32>
    %38 = arith.cmpi slt, %36, %37 : vector<16x1xi32>
    %cst_12 = arith.constant 0.000000e+00 : f32
    %39 = vector.broadcast %cst_12 : f32 to vector<16x1xf32>
    %40 = arith.select %38, %32, %39 : vector<16x1xi1>, vector<16x1xf32>
    %c0_13 = arith.constant 0 : index
    %c0_14 = arith.constant 0 : index
    %c0_15 = arith.constant 0 : index
    %41 = vector.load %arg5[%c0_13, %c0_14, %c0_15] : memref<1x1x1xf32, #tpu.memory_space<vmem>>, vector<1x1x1xf32>
    %42 = vector.shape_cast %40 : vector<16x1xf32> to vector<1x16x1xf32>
    %cst_16 = arith.constant dense<0.000000e+00> : vector<1xf32>
    %43 = vector.multi_reduction <add>, %42, %cst_16 [1, 2] : vector<1x16x1xf32> to vector<1xf32>
    %44 = vector.shape_cast %43 : vector<1xf32> to vector<1x1x1xf32>
    %45 = vector.extract %44[0, 0, 0] : f32 from vector<1x1x1xf32>
    %46 = vector.broadcast %45 : f32 to vector<1x1x1xf32>
    %47 = arith.addf %41, %46 : vector<1x1x1xf32>
    %c0_17 = arith.constant 0 : index
    %c0_18 = arith.constant 0 : index
    %c0_19 = arith.constant 0 : index
    %48 = vector.load %arg5[%c0_17, %c0_18, %c0_19] : memref<1x1x1xf32, #tpu.memory_space<vmem>>, vector<1x1x1xf32>
    tpu.vector_store %arg5[%c0_17, %c0_18, %c0_19], %47 {strides = array<i32>} : memref<1x1x1xf32, #tpu.memory_space<vmem>>, vector<1x1x1xf32>,
    return
  }
  func.func @transform_0(%arg0: i32, %arg1: i32) -> (i32, i32) {
    %c1_i32 = arith.constant 1 : i32
    %0 = arith.muli %arg0, %c1_i32 : i32
    %1 = arith.addi %0, %arg1 : i32
    %c0_i32 = arith.constant 0 : i32
    %2 = arith.minsi %1, %c0_i32 : i32
    %c0_i32_0 = arith.constant 0 : i32
    %c0_i32_1 = arith.constant 0 : i32
    return %2, %c0_i32_0 : i32, i32
  }
  func.func @transform_1(%arg0: i32, %arg1: i32) -> (i32, i32) {
    %c1_i32 = arith.constant 1 : i32
    %0 = arith.muli %arg0, %c1_i32 : i32
    %1 = arith.addi %0, %arg1 : i32
    %c0_i32 = arith.constant 0 : i32
    %2 = arith.minsi %1, %c0_i32 : i32
    %c0_i32_0 = arith.constant 0 : i32
    %c0_i32_1 = arith.constant 0 : i32
    return %2, %c0_i32_0 : i32, i32
  }
  func.func @transform_2(%arg0: i32, %arg1: i32) -> (i32, i32) {
    %c1_i32 = arith.constant 1 : i32
    %0 = arith.muli %arg0, %c1_i32 : i32
    %1 = arith.addi %0, %arg1 : i32
    %c0_i32 = arith.constant 0 : i32
    %2 = arith.minsi %1, %c0_i32 : i32
    %c0_i32_0 = arith.constant 0 : i32
    %c0_i32_1 = arith.constant 0 : i32
    return %2, %c0_i32_0 : i32, i32
  }
  func.func @transform_3(%arg0: i32, %arg1: i32) -> (i32, i32, i32) {
    %c0_i32 = arith.constant 0 : i32
    %c0_i32_0 = arith.constant 0 : i32
    %c0_i32_1 = arith.constant 0 : i32
    return %arg0, %c0_i32, %c0_i32_0 : i32, i32, i32
  }
}

</mosaic_0001>

<llo_original>
// kernel: tpu_custom_call.1
$region0: #{tpu_custom_call.1}
  #allocation0 [shape = 'u32[]', space=smem, size = 0x4, offset = 0x4, fixed_abs, tag = 'smem constant byte address 0x4 - core index']
  #allocation1 [shape = 'u32[144,128]{1,0:T(1,128)}', space=vmem, size = 0x12000, scoped, tag = 'internal scratch']
  %s0 = inlined_call_operand.vmem [shape: f32[16,50], index: 0, kind: input, shape index: {}]
  %s1 = inlined_call_operand.vmem [shape: s32[16,1], index: 1, kind: input, shape index: {}]
  %s2 = inlined_call_operand.vmem [shape: f32[16,1], index: 2, kind: input, shape index: {}]
  %s3 = inlined_call_operand.vmem [shape: f32[2,1,1], index: 3, kind: output, shape index: {}]
  %s4 = sld [smem:[#allocation0]]
  $region49: #{tpu_custom_call.1} parent=0
    _
  %s6 = ssub.s32 1, %s4
  %s7 = scalar_select 0, %s6, %s4
  loop: start=0, step=1, limit=4
  $region2: #{tpu_custom_call.1} parent=0 // loop_pre_header
    _
  $region3: #{tpu_custom_call.1} parent=0 // loop_header
    %s9 = sphi 0, %s13
    %p10 = scmp.ge.s32.totalorder %s9, 4
    %s16 = sphi 0, %s28
    %s17 = sphi 0, %s24
    %s18 = sphi 0, %s16
    %s19 = sphi 0, %s17
    %s20 = sphi 0, %s18
    %s21 = sphi 0, %s19
    %s37 = sphi 0, %s39
    %s40 = sphi 0, %s37
    %s41 = sphi 0, %s40
    %s57 = sphi 0, %s41
    %s69 = sphi 0, %s71
    %s72 = sphi 0, %s69
    %s73 = sphi 0, %s72
    %s89 = sphi 0, %s73
    %s101 = sphi 0, %s103
    %s104 = sphi 0, %s101
    %s105 = sphi 0, %s104
    %s121 = sphi 0, %s105
    %s127 = sphi 0, %s129
    %s130 = sphi 0, %s127
    %s131 = sphi 0, %s130
    %s147 = sphi 0, %s131
  $region4: #{tpu_custom_call.1} parent=0 // loop_header_branch
    %12 = sbr.rel (%p10) target = $region8
  $region5: #{tpu_custom_call.1} parent=0 // loop_body
    %s14 = ssub.s32 %s9, 1
    %s15 = ssub.s32 %s9, 2
    %s22 = sadd.s32 1, %s17
    %p23 = scmp.ge.s32.totalorder %s22, 1
    %s24 = scalar_select %p23, 0, %s22
    %s25 = sadd.s32 1, %s16
    %s26 = scalar_select %p23, %s25, %s16
    %p27 = scmp.ge.s32.totalorder %s26, 2
    %s28 = scalar_select %p27, 0, %s26
    %s29 = sadd.s32 %s16, %s17
    %p30 = scmp.lt.s32.totalorder %s29, 0
    %s31 = scalar_select %p30, %s29, 0
    %s32 = sadd.s32 %s28, %s24
    %p33 = scmp.lt.s32.totalorder %s32, 0
    %s34 = scalar_select %p33, %s32, 0
    %s35 = ssub.s32 %s31, %s34
    %p36 = scmp.eq.s32.totalorder %s35, 0
    %s38 = sadd.s32 %s37, 1
    %s39 = scalar_select %p36, %s37, %s38
    %p42 = pneg %p36
    %p43 = scmp.eq.s32.totalorder %s9, 1
    %p44 = por %p42, %p43
    %p45 = scmp.ne.s32.totalorder %s37, %s40
    %p46 = scmp.eq.s32.totalorder %s9, 0
    %p47 = por %p45, %p46
    %p48 = scmp.ne.s32.totalorder %s37, %s40
    %p49 = scmp.eq.s32.totalorder %s14, 1
    %p50 = por %p48, %p49
    %p51 = scmp.ne.s32.totalorder %s40, %s41
    %p52 = scmp.eq.s32.totalorder %s14, 0
    %p53 = por %p51, %p52
    %p54 = scmp.ne.s32.totalorder %s40, %s41
    %p55 = scmp.eq.s32.totalorder %s15, 1
    %p56 = por %p54, %p55
    %p58 = scmp.ne.s32.totalorder %s41, %s57
    %p59 = scmp.eq.s32.totalorder %s15, 0
    %p60 = por %p58, %p59
    %s61 = sadd.s32 %s16, %s17
    %p62 = scmp.lt.s32.totalorder %s61, 0
    %s63 = scalar_select %p62, %s61, 0
    %s64 = sadd.s32 %s28, %s24
    %p65 = scmp.lt.s32.totalorder %s64, 0
    %s66 = scalar_select %p65, %s64, 0
    %s67 = ssub.s32 %s63, %s66
    %p68 = scmp.eq.s32.totalorder %s67, 0
    %s70 = sadd.s32 %s69, 1
    %s71 = scalar_select %p68, %s69, %s70
    %p74 = pneg %p68
    %p75 = scmp.eq.s32.totalorder %s9, 1
    %p76 = por %p74, %p75
    %p77 = scmp.ne.s32.totalorder %s69, %s72
    %p78 = scmp.eq.s32.totalorder %s9, 0
    %p79 = por %p77, %p78
    %p80 = scmp.ne.s32.totalorder %s69, %s72
    %p81 = scmp.eq.s32.totalorder %s14, 1
    %p82 = por %p80, %p81
    %p83 = scmp.ne.s32.totalorder %s72, %s73
    %p84 = scmp.eq.s32.totalorder %s14, 0
    %p85 = por %p83, %p84
    %p86 = scmp.ne.s32.totalorder %s72, %s73
    %p87 = scmp.eq.s32.totalorder %s15, 1
    %p88 = por %p86, %p87
    %p90 = scmp.ne.s32.totalorder %s73, %s89
    %p91 = scmp.eq.s32.totalorder %s15, 0
    %p92 = por %p90, %p91
    %s93 = sadd.s32 %s16, %s17
    %p94 = scmp.lt.s32.totalorder %s93, 0
    %s95 = scalar_select %p94, %s93, 0
    %s96 = sadd.s32 %s28, %s24
    %p97 = scmp.lt.s32.totalorder %s96, 0
    %s98 = scalar_select %p97, %s96, 0
    %s99 = ssub.s32 %s95, %s98
    %p100 = scmp.eq.s32.totalorder %s99, 0
    %s102 = sadd.s32 %s101, 1
    %s103 = scalar_select %p100, %s101, %s102
    %p106 = pneg %p100
    %p107 = scmp.eq.s32.totalorder %s9, 1
    %p108 = por %p106, %p107
    %p109 = scmp.ne.s32.totalorder %s101, %s104
    %p110 = scmp.eq.s32.totalorder %s9, 0
    %p111 = por %p109, %p110
    %p112 = scmp.ne.s32.totalorder %s101, %s104
    %p113 = scmp.eq.s32.totalorder %s14, 1
    %p114 = por %p112, %p113
    %p115 = scmp.ne.s32.totalorder %s104, %s105
    %p116 = scmp.eq.s32.totalorder %s14, 0
    %p117 = por %p115, %p116
    %p118 = scmp.ne.s32.totalorder %s104, %s105
    %p119 = scmp.eq.s32.totalorder %s15, 1
    %p120 = por %p118, %p119
    %p122 = scmp.ne.s32.totalorder %s105, %s121
    %p123 = scmp.eq.s32.totalorder %s15, 0
    %p124 = por %p122, %p123
    %s125 = ssub.s32 %s16, %s28
    %p126 = scmp.eq.s32.totalorder %s125, 0
    %s128 = sadd.s32 %s127, 1
    %s129 = scalar_select %p126, %s127, %s128
    %p132 = pneg %p126
    %p133 = scmp.eq.s32.totalorder %s9, 1
    %p134 = por %p132, %p133
    %p135 = scmp.ne.s32.totalorder %s127, %s130
    %p136 = scmp.eq.s32.totalorder %s9, 0
    %p137 = por %p135, %p136
    %p138 = scmp.ne.s32.totalorder %s127, %s130
    %p139 = scmp.eq.s32.totalorder %s14, 1
    %p140 = por %p138, %p139
    %p141 = scmp.ne.s32.totalorder %s130, %s131
    %p142 = scmp.eq.s32.totalorder %s14, 0
    %p143 = por %p141, %p142
    %p144 = scmp.ne.s32.totalorder %s130, %s131
    %p145 = scmp.eq.s32.totalorder %s15, 1
    %p146 = por %p144, %p145
    %p148 = scmp.ne.s32.totalorder %s131, %s147
    %p149 = scmp.eq.s32.totalorder %s15, 0
    %p150 = por %p148, %p149
    %p151 = scmp.le.s32.totalorder 1, %s9
    %p152 = scmp.lt.s32.totalorder %s9, 3
    %p153 = pnand %p151, %p152
    %p154 = pneg %p153
    // Predicated region
    $region9: #{tpu_custom_call.1} parent=5 // pred_check
      _
    $region10: #{tpu_custom_call.1} parent=5 // pred_check_branch
      %156 = sbr.rel (%p153) target = $region12
    $region11: #{tpu_custom_call.1} parent=5 // pred_region
      %s157 = ssub.s32 %s9, 1
    $region12: #{tpu_custom_call.1} parent=5 // pred_fallthru
      _
    %p158 = scmp.lt.s32.totalorder %s9, 2
    // Predicated region
    $region13: #{tpu_custom_call.1} parent=5 // pred_check
      %p159 = pneg %p158
    $region14: #{tpu_custom_call.1} parent=5 // pred_check_branch
      %161 = sbr.rel (%p159) target = $region16
    $region15: #{tpu_custom_call.1} parent=5 // pred_region
      // Predicated region
      $region17: #{tpu_custom_call.1} parent=15 // pred_check
        %p162 = pneg %p47
      $region18: #{tpu_custom_call.1} parent=15 // pred_check_branch
        %164 = sbr.rel (%p162) target = $region20
      $region19: #{tpu_custom_call.1} parent=15 // pred_region
        %s165 = sadd.s32 %s16, %s17
        %p166 = scmp.lt.s32.totalorder %s165, 0
        %s167 = scalar_select %p166, %s165, 0
        %s168 = smul.u32 2, %s167
        %p169 = scmp.lt.s32.totalorder %s168, 1
        %s170 = scalar_select %p169, %s168, 1
        %s171 = smul.addr %s170, 8
        %s172 = scalar_lea.vmem %s0, %s171
        %s173 = sadd.s32 %s16, %s17
        %p174 = scmp.lt.s32.totalorder %s173, 0
        %s175 = scalar_select %p174, %s173, 0
        %s176 = smul.u32 2, %s175
      $region20: #{tpu_custom_call.1} parent=15 // pred_fallthru
        _
      // Predicated region
      $region21: #{tpu_custom_call.1} parent=15 // pred_check
        %p177 = pneg %p79
      $region22: #{tpu_custom_call.1} parent=15 // pred_check_branch
        %179 = sbr.rel (%p177) target = $region24
      $region23: #{tpu_custom_call.1} parent=15 // pred_region
        %s180 = sadd.s32 %s16, %s17
        %p181 = scmp.lt.s32.totalorder %s180, 0
        %s182 = scalar_select %p181, %s180, 0
        %s183 = smul.u32 2, %s182
        %p184 = scmp.lt.s32.totalorder %s183, 1
        %s185 = scalar_select %p184, %s183, 1
        %s186 = smul.addr %s185, 8
        %s187 = scalar_lea.vmem %s1, %s186
        %s188 = sadd.s32 %s16, %s17
        %p189 = scmp.lt.s32.totalorder %s188, 0
        %s190 = scalar_select %p189, %s188, 0
        %s191 = smul.u32 2, %s190
      $region24: #{tpu_custom_call.1} parent=15 // pred_fallthru
        _
      // Predicated region
      $region25: #{tpu_custom_call.1} parent=15 // pred_check
        %p192 = pneg %p111
      $region26: #{tpu_custom_call.1} parent=15 // pred_check_branch
        %194 = sbr.rel (%p192) target = $region28
      $region27: #{tpu_custom_call.1} parent=15 // pred_region
        %s195 = sadd.s32 %s16, %s17
        %p196 = scmp.lt.s32.totalorder %s195, 0
        %s197 = scalar_select %p196, %s195, 0
        %s198 = smul.u32 2, %s197
        %p199 = scmp.lt.s32.totalorder %s198, 1
        %s200 = scalar_select %p199, %s198, 1
        %s201 = smul.addr %s200, 8
        %s202 = scalar_lea.vmem %s2, %s201
        %s203 = sadd.s32 %s16, %s17
        %p204 = scmp.lt.s32.totalorder %s203, 0
        %s205 = scalar_select %p204, %s203, 0
        %s206 = smul.u32 2, %s205
      $region28: #{tpu_custom_call.1} parent=15 // pred_fallthru
        _
    $region16: #{tpu_custom_call.1} parent=5 // pred_fallthru
      _
    %p207 = scmp.le.s32.totalorder 1, %s9
    %p208 = scmp.lt.s32.totalorder %s9, 3
    %p209 = pnand %p207, %p208
    %p210 = pneg %p209
    // Predicated region
    $region29: #{tpu_custom_call.1} parent=5 // pred_check
      _
    $region30: #{tpu_custom_call.1} parent=5 // pred_check_branch
      %212 = sbr.rel (%p209) target = $region32
    $region31: #{tpu_custom_call.1} parent=5 // pred_region
      %s213 = ssub.s32 %s9, 1
      %s214 = sadd.s32 %s18, %s19
      %p215 = scmp.lt.s32.totalorder %s214, 0
      %s216 = scalar_select %p215, %s214, 0
      %s217 = smul.u32 2, %s216
      %p218 = scmp.lt.s32.totalorder %s217, 1
      %s219 = scalar_select %p218, %s217, 1
      %s220 = smul.addr %s219, 8
      %s221 = scalar_lea.vmem %s0, %s220
      %p222 = pneg %p53
      %p223 = pneg %p50
      %s224 = sadd.s32 %s18, %s19
      %p225 = scmp.lt.s32.totalorder %s224, 0
      %s226 = scalar_select %p225, %s224, 0
      %s227 = smul.u32 2, %s226
      %p228 = scmp.lt.s32.totalorder %s227, 1
      %s229 = scalar_select %p228, %s227, 1
      %s230 = smul.addr %s229, 8
      %s231 = scalar_lea.vmem %s1, %s230
      %p232 = pneg %p85
      %p233 = pneg %p82
      %s234 = sadd.s32 %s18, %s19
      %p235 = scmp.lt.s32.totalorder %s234, 0
      %s236 = scalar_select %p235, %s234, 0
      %s237 = smul.u32 2, %s236
      %p238 = scmp.lt.s32.totalorder %s237, 1
      %s239 = scalar_select %p238, %s237, 1
      %s240 = smul.addr %s239, 8
      %s241 = scalar_lea.vmem %s2, %s240
      %p242 = pneg %p117
      %p243 = pneg %p114
      %p244 = pneg %p143
      %p245 = pneg %p140
      %p246 = scmp.lt.s32.totalorder %s18, 1
      %s247 = scalar_select %p246, %s18, 1
      %s248 = scalar_lea.vmem %s3, %s247
      %s249 = sadd.s32 %s18, %s19
      %p250 = scmp.lt.s32.totalorder %s249, 0
      %s251 = scalar_select %p250, %s249, 0
      %s252 = smul.u32 2, %s251
      %p253 = scmp.lt.s32.totalorder %s252, 1
      %s254 = scalar_select %p253, %s252, 1
      %s255 = smul.addr %s254, 8
      %s256 = scalar_lea.vmem %s0, %s255
      %s257 = sadd.s32 %s18, %s19
      %p258 = scmp.lt.s32.totalorder %s257, 0
      %s259 = scalar_select %p258, %s257, 0
      %s260 = smul.u32 2, %s259
      %s261 = sadd.s32 %s18, %s19
      %p262 = scmp.lt.s32.totalorder %s261, 0
      %s263 = scalar_select %p262, %s261, 0
      %s264 = smul.u32 2, %s263
      %p265 = scmp.lt.s32.totalorder %s264, 1
      %s266 = scalar_select %p265, %s264, 1
      %s267 = smul.addr %s266, 8
      %s268 = scalar_lea.vmem %s1, %s267
      %s269 = sadd.s32 %s18, %s19
      %p270 = scmp.lt.s32.totalorder %s269, 0
      %s271 = scalar_select %p270, %s269, 0
      %s272 = smul.u32 2, %s271
      %s273 = sadd.s32 %s18, %s19
      %p274 = scmp.lt.s32.totalorder %s273, 0
      %s275 = scalar_select %p274, %s273, 0
      %s276 = smul.u32 2, %s275
      %p277 = scmp.lt.s32.totalorder %s276, 1
      %s278 = scalar_select %p277, %s276, 1
      %s279 = smul.addr %s278, 8
      %s280 = scalar_lea.vmem %s2, %s279
      %s281 = sadd.s32 %s18, %s19
      %p282 = scmp.lt.s32.totalorder %s281, 0
      %s283 = scalar_select %p282, %s281, 0
      %s284 = smul.u32 2, %s283
      %p285 = scmp.lt.s32.totalorder %s18, 1
      %s286 = scalar_select %p285, %s18, 1
      %s287 = scalar_lea.vmem %s3, %s286
      %p288 = scmp.eq.s32.totalorder %s19, 0
      // Predicated region
      $region33: #{tpu_custom_call.1} parent=31 // pred_check
        %p289 = pneg %p288
      $region34: #{tpu_custom_call.1} parent=31 // pred_check_branch
        %291 = sbr.rel (%p289) target = $region36
      $region35: #{tpu_custom_call.1} parent=31 // pred_region
        %vm292 = vcmask 0
        %293 = vst.msk [vmem:[%s287] sm:$0x1] %vm292, 0.0
      $region36: #{tpu_custom_call.1} parent=31 // pred_fallthru
        _
      %s294 = sadd.s32 %s18, %s19
      %v295 = vld [vmem:[%s256] sm:$0xff]
      %v296 = vld [vmem:[%s256 + $0x8] sm:$0xff]
      %v297 = vld [vmem:[%s268] sm:$0xff]
      %v298 = vld [vmem:[%s268 + $0x8] sm:$0xff]
      %v299 = vlaneseq
      %v300 = vand.u32 %v299, 127
      %301 = vset.pattern.permute.xlu0 0
      %302 = vperm.xlu0 %301, %v297
      %v303 = vpop.permute.xlu0 %302
      %304 = vset.pattern.permute.xlu0 0
      %305 = vperm.xlu0 %304, %v298
      %v306 = vpop.permute.xlu0 %305
      %vm307 = vcmp.eq.s32.totalorder %v300, %v303
      %vm308 = vcmp.eq.s32.totalorder %v300, %v306
      %v309 = vsel %vm307, %v295, 0.0
      %v310 = vsel %vm308, %v296, 0.0
      %vm311 = vcmask 408576
      %v312 = vsel %vm311, %v309, 0.0
      %313 = vadd.xlane.f32.xlu0 %v312
      %v314 = vpop.xlane.xlu0 %313
      %v315 = vsel %vm311, %v310, 0.0
      %316 = vadd.xlane.f32.xlu0 %v315
      %v317 = vpop.xlane.xlu0 %316
      %v318 = vsel %vm311, %v295, -inf
      %319 = vmax.xlane.f32.xlu0 %v318
      %v320 = vpop.xlane.xlu0 %319
      %v321 = vsel %vm311, %v296, -inf
      %322 = vmax.xlane.f32.xlu0 %v321
      %v323 = vpop.xlane.xlu0 %322
      %v324 = vsub.f32 %v295, %v320
      %v325 = vsub.f32 %v296, %v323
      %v326 = vmul.f32 %v324, 1.442695
      %v327 = vpow.pop %v326
      %v328 = vmul.f32 %v325, 1.442695
      %v329 = vpow.pop %v328
      %v330 = vsel %vm311, %v327, 0.0
      %331 = vadd.xlane.f32.xlu0 %v330
      %v332 = vpop.xlane.xlu0 %331
      %v333 = vsel %vm311, %v329, 0.0
      %334 = vadd.xlane.f32.xlu0 %v333
      %v335 = vpop.xlane.xlu0 %334
      %v336 = vlog2.pop %v332
      %v337 = vmul.f32 %v336, 0.6931472
      %v338 = vlog2.pop %v335
      %v339 = vmul.f32 %v338, 0.6931472
      %v340 = vadd.f32 %v320, %v337
      %v341 = vadd.f32 %v323, %v339
      %v342 = vsub.f32 %v314, %v340
      %v343 = vsub.f32 %v317, %v341
      %v344 = vmul.f32 %v342, 1.442695
      %v345 = vpow.pop %v344
      %v346 = vmul.f32 %v343, 1.442695
      %v347 = vpow.pop %v346
      %v348 = vsub.f32 1.0, %v345
      %v349 = vsub.f32 1.0, %v347
      %v350 = vmul.f32 %v348, %v348
      %v351 = vmul.f32 %v349, %v349
      %v352 = vsub.f32 0.0, %v350
      %v353 = vsub.f32 0.0, %v351
      %v354 = vmul.f32 %v352, %v342
      %v355 = vmul.f32 %v353, %v343
      %v356 = vld [vmem:[%s280] sm:$0xff]
      %v357 = vld [vmem:[%s280 + $0x8] sm:$0xff]
      %v358 = vmul.f32 %v354, %v356
      %v359 = vmul.f32 %v355, %v357
      %s360 = smul.u32 %s294, 16
      %v361 = vlaneseq
      %v362 = vshrl.u32 %v361, 7
      %v363 = vadd.s32 %v362, 8
      %v364 = vstv %s360
      %v365 = vadd.s32 %v364, %v362
      %v366 = vadd.s32 %v364, %v363
      %vm367 = vcmp.lt.s32.totalorder %v365, 16
      %vm368 = vcmp.lt.s32.totalorder %v366, 16
      %v369 = vsel %vm367, %v358, 0.0
      %v370 = vsel %vm368, %v359, 0.0
      %v371 = vld [vmem:[%s287] sm:$0x1]
      %vm372 = vcmask 7168
      %v373 = vsel %vm372, %v369, 0.0
      %v374 = vsel %vm372, %v370, 0.0
      %v375 = vadd.f32 %v373, %v374
      %376 = vadd.xlane.f32.xlu0 %v375
      %v377 = vpop.xlane.xlu0 %376
      %v378 = vrot.slane %v377, 4
      %v379 = vadd.f32 %v377, %v378
      %v380 = vrot.slane %v379, 2
      %v381 = vadd.f32 %v379, %v380
      %v382 = vrot.slane %v381, 1
      %v383 = vadd.f32 %v381, %v382
      %s384 = vtos %v383
      %v385 = vstv %s384
      %v386 = vadd.f32 %v371, %v385
      %vm387 = vcmask 0
      %388 = vst.msk [vmem:[%s287] sm:$0x1] %vm387, %v386
      %p389 = scmp.lt.s32.totalorder %s18, 1
      %s390 = scalar_select %p389, %s18, 1
      %s391 = scalar_lea.vmem %s3, %s390
      // Predicated region
      $region37: #{tpu_custom_call.1} parent=31 // pred_check
        %p392 = pneg %p140
      $region38: #{tpu_custom_call.1} parent=31 // pred_check_branch
        %394 = sbr.rel (%p392) target = $region40
      $region39: #{tpu_custom_call.1} parent=31 // pred_region
        _
      $region40: #{tpu_custom_call.1} parent=31 // pred_fallthru
        _
    $region32: #{tpu_custom_call.1} parent=5 // pred_fallthru
      _
    %p395 = scmp.le.s32.totalorder 2, %s9
    // Predicated region
    $region41: #{tpu_custom_call.1} parent=5 // pred_check
      %p396 = pneg %p395
    $region42: #{tpu_custom_call.1} parent=5 // pred_check_branch
      %398 = sbr.rel (%p396) target = $region44
    $region43: #{tpu_custom_call.1} parent=5 // pred_region
      %s399 = ssub.s32 %s9, 2
      // Predicated region
      $region45: #{tpu_custom_call.1} parent=43 // pred_check
        %p400 = pneg %p146
      $region46: #{tpu_custom_call.1} parent=43 // pred_check_branch
        %402 = sbr.rel (%p400) target = $region48
      $region47: #{tpu_custom_call.1} parent=43 // pred_region
        %p403 = scmp.lt.s32.totalorder %s20, 1
        %s404 = scalar_select %p403, %s20, 1
        %s405 = scalar_lea.vmem %s3, %s404
      $region48: #{tpu_custom_call.1} parent=43 // pred_fallthru
        _
    $region44: #{tpu_custom_call.1} parent=5 // pred_fallthru
      _
  $region6: #{tpu_custom_call.1} parent=0 // loop_footer
    %s13 = sadd.s32 1, %s9
  $region7: #{tpu_custom_call.1} parent=0 // loop_footer_branch
    %8 = sbr.rel target = $region3
  $region8: #{tpu_custom_call.1} parent=0 // loop_exit
    _

</llo_original>
